<compile_context>
chip_gen: v7x
topology: tpu7x:2x2x1
jax: 0.10.0
libtpu: 0.0.40
codegen_flags: <defaults>
</compile_context>

<pallas_src>
import functools

import jax
import jax.numpy as jnp
from jax.experimental import pallas as pl
from jax.experimental.pallas import tpu as pltpu


def _round_up(n, m):
    return ((n + m - 1) // m) * m


# ---------------------------------------------------------------------------
# Kernel: one class tile of the FC layer.
#   x_ref: (Bp, K)   resident in VMEM across the whole grid
#   w_ref: (K, TN)   streamed weight tile (pre-transposed, pre-padded, pre-cast)
#   b_ref: (1, TN)   bias tile (f32)
#   o_ref: (Bp, TN)  lane-dense output tile
# ---------------------------------------------------------------------------
def fc_kernel(x_ref, w_ref, b_ref, o_ref):
    x = x_ref[...].astype(w_ref.dtype)  # bf16xbf16 MXU when streaming bf16; no-op for f32
    acc = jnp.dot(x, w_ref[...], preferred_element_type=jnp.float32)
    o_ref[...] = acc + b_ref[...]


# ---------------------------------------------------------------------------
# One-time parameter preparation (do this at load time, NOT per forward call):
# pad classes to the tile boundary, transpose to [K, C_pad], cast to the
# streaming dtype.  Returns everything the jitted forward needs.
# ---------------------------------------------------------------------------
def prepare_fc_params(weight, bias, *, stream_dtype=jnp.bfloat16, max_tn=16384):
    C, K = weight.shape
    itemsize = jnp.dtype(stream_dtype).itemsize

    # Cap the double-buffered weight-tile footprint at ~32 MiB: safe inside the
    # 48 MiB scoped-VMEM limit below on v7x (64 MiB physical) and v5e/v6e (128 MiB).
    tn_cap = (32 * 1024 * 1024) // (2 * K * itemsize)
    tn = min(max_tn, tn_cap)
    tn = max(128, (tn // 128) * 128)          # lane-dense (multiple of 128)
    tn = min(tn, _round_up(C, 128))           # never bigger than the padded class dim
    c_pad = _round_up(C, tn)

    if c_pad != C:
        weight = jnp.pad(weight, ((0, c_pad - C), (0, 0)))
        bias = jnp.pad(bias, (0, c_pad - C))

    w_t = jnp.asarray(weight.T, dtype=stream_dtype)          # [K, C_pad], streamed dtype
    bias_2d = jnp.asarray(bias, jnp.float32).reshape(1, c_pad)
    return {"w_t": w_t, "bias": bias_2d, "tn": tn, "num_classes": C}


# ---------------------------------------------------------------------------
# Jitted forward: only pads the (tiny) batch; the weight path is untouched.
# ---------------------------------------------------------------------------
@functools.partial(jax.jit, static_argnames=("tn",))
def _fc_forward(x, w_t, bias_2d, *, tn):
    B, K = x.shape
    c_pad = w_t.shape[1]
    b_pad = _round_up(B, 8)                   # sublane-full MXU tile
    if b_pad != B:
        x = jnp.pad(x, ((0, b_pad - B), (0, 0)))

    out = pl.pallas_call(
        fc_kernel,
        out_shape=jax.ShapeDtypeStruct((b_pad, c_pad), jnp.float32),
        grid=(c_pad // tn,),
        in_specs=[
            pl.BlockSpec((b_pad, K), lambda j: (0, 0)),   # x: resident (same block each step)
            pl.BlockSpec((K, tn),    lambda j: (0, j)),   # weight tile: streamed / pipelined
            pl.BlockSpec((1, tn),    lambda j: (0, j)),   # bias tile
        ],
        out_specs=pl.BlockSpec((b_pad, tn), lambda j: (0, j)),
        compiler_params=pltpu.CompilerParams(
            dimension_semantics=("parallel",),            # class tiles shard across v7x TCs
            vmem_limit_bytes=48 * 1024 * 1024),
        cost_estimate=pl.CostEstimate(
            flops=2 * b_pad * K * c_pad,
            transcendentals=0,
            bytes_accessed=(x.dtype.itemsize * b_pad * K
                            + w_t.dtype.itemsize * K * c_pad
                            + 4 * b_pad * c_pad
                            + 4 * c_pad)),
    )(x, w_t, bias_2d)
    return out


def arcface_finetune_forward(x, params):
    """x: [B, 512] embeddings -> [B, num_classes] logits (== nn.Linear(512, C))."""
    out = _fc_forward(x, params["w_t"], params["bias"], tn=params["tn"])
    B, C = x.shape[0], params["num_classes"]
    if out.shape[0] != B or out.shape[1] != C:
        out = out[:B, :C]                      # only pay the slice if padding existed
    return out


if __name__ == "__main__":
    key = jax.random.PRNGKey(0)
    k_x, k_w, k_b = jax.random.split(key, 3)

    batch = 4            # mini-batch of face embeddings
    in_features = 512    # ArcFace embedding dimension (fixed by the module)
    num_classes = 16     # small synthetic identity count

    x = jax.random.normal(k_x, (batch, in_features), dtype=jnp.float32)
    bound = 1.0 / (in_features ** 0.5)         # nn.Linear-style init range
    weight = jax.random.uniform(k_w, (num_classes, in_features),
                                dtype=jnp.float32, minval=-bound, maxval=bound)
    bias = jax.random.uniform(k_b, (num_classes,),
                              dtype=jnp.float32, minval=-bound, maxval=bound)

    ref = x @ weight.T + bias                  # plain-JAX reference (== torch nn.Linear)

    # Exact f32 path (weights prepared once, streamed in f32).
    params_f32 = prepare_fc_params(weight, bias, stream_dtype=jnp.float32)
    out_f32 = jax.block_until_ready(arcface_finetune_forward(x, params_f32))
    assert out_f32.shape == (batch, num_classes)
    assert jnp.allclose(out_f32, ref, atol=1e-4, rtol=1e-4)

    # Default bf16-streaming path (one-time offline cast; f32 accumulation).
    params_bf16 = prepare_fc_params(weight, bias)   # stream_dtype=bf16 by default
    out_bf16 = jax.block_until_ready(arcface_finetune_forward(x, params_bf16))
    assert out_bf16.shape == (batch, num_classes)
    assert jnp.allclose(out_bf16, ref, atol=3e-2, rtol=3e-2)   # bf16 streaming tolerance

    print("KERNEL_OK")
</pallas_src>

<mosaic_0001>
module attributes {stable_mosaic.version = 11 : i64} {
  func.func @fc_kernel(%arg0: i32, %arg1: memref<8x512xf32, #tpu.memory_space<vmem>>, %arg2: memref<512x128xf32, #tpu.memory_space<vmem>>, %arg3: memref<1x128xf32, #tpu.memory_space<vmem>>, %arg4: memref<8x128xf32, #tpu.memory_space<vmem>>) attributes {dimension_semantics = [#tpu.dimension_semantics<parallel>], iteration_bounds = array<i64: 1>, scalar_prefetch = 0 : i64, scratch_operands = 0 : i64, tpu.core_type = #tpu.core_type<tc>, window_params = [{pipeline_mode = #tpu.pipeline_mode<synchronous>, transform_indices = @transform_0, window_bounds = array<i64: 8, 512>}, {transform_indices = @transform_1, window_bounds = array<i64: 512, 128>}, {transform_indices = @transform_2, window_bounds = array<i64: 1, 128>}, {transform_indices = @transform_3, window_bounds = array<i64: 8, 128>}]} {
    %c0 = arith.constant 0 : index
    %c0_0 = arith.constant 0 : index
    %0 = vector.load %arg1[%c0, %c0_0] : memref<8x512xf32, #tpu.memory_space<vmem>>, vector<8x512xf32>
    %c0_1 = arith.constant 0 : index
    %c0_2 = arith.constant 0 : index
    %1 = vector.load %arg2[%c0_1, %c0_2] : memref<512x128xf32, #tpu.memory_space<vmem>>, vector<512x128xf32>
    %cst = arith.constant dense<0.000000e+00> : vector<8x128xf32>
    %2 = tpu.matmul %0, %1, %cst {dimension_numbers = #tpu.dot_dimension_numbers<[1], [0], [0], [1], [0, 0, 1, 1], [], []>} : vector<8x512xf32>, vector<512x128xf32>, vector<8x128xf32> -> vector<8x128xf32>
    %c0_3 = arith.constant 0 : index
    %c0_4 = arith.constant 0 : index
    %3 = vector.load %arg3[%c0_3, %c0_4] : memref<1x128xf32, #tpu.memory_space<vmem>>, vector<1x128xf32>
    %4 = vector.broadcast %3 : vector<1x128xf32> to vector<8x128xf32>
    %5 = arith.addf %2, %4 : vector<8x128xf32>
    %c0_5 = arith.constant 0 : index
    %c0_6 = arith.constant 0 : index
    %6 = vector.load %arg4[%c0_5, %c0_6] : memref<8x128xf32, #tpu.memory_space<vmem>>, vector<8x128xf32>
    tpu.vector_store %arg4[%c0_5, %c0_6], %5 {strides = array<i32>} : memref<8x128xf32, #tpu.memory_space<vmem>>, vector<8x128xf32>,
    return
  }
  func.func @transform_0(%arg0: i32) -> (i32, i32) {
    %c0_i32 = arith.constant 0 : i32
    %c0_i32_0 = arith.constant 0 : i32
    %c0_i32_1 = arith.constant 0 : i32
    return %c0_i32, %c0_i32_0 : i32, i32
  }
  func.func @transform_1(%arg0: i32) -> (i32, i32) {
    %c0_i32 = arith.constant 0 : i32
    %c0_i32_0 = arith.constant 0 : i32
    return %c0_i32, %arg0 : i32, i32
  }
  func.func @transform_2(%arg0: i32) -> (i32, i32) {
    %c0_i32 = arith.constant 0 : i32
    %c0_i32_0 = arith.constant 0 : i32
    return %c0_i32, %arg0 : i32, i32
  }
  func.func @transform_3(%arg0: i32) -> (i32, i32) {
    %c0_i32 = arith.constant 0 : i32
    %c0_i32_0 = arith.constant 0 : i32
    return %c0_i32, %arg0 : i32, i32
  }
}

</mosaic_0001>

<llo_original>
// kernel: _fc_forward.1
$region0: #{_fc_forward.1}
  #allocation0 [shape = 'u32[]', space=smem, size = 0x4, offset = 0x4, fixed_abs, tag = 'smem constant byte address 0x4 - core index']
  #allocation1 [shape = 'u32[144,128]{1,0:T(1,128)}', space=vmem, size = 0x12000, scoped, tag = 'internal scratch']
  %s0 = inlined_call_operand.vmem [shape: f32[8,512], index: 0, kind: input, shape index: {}]
  %s1 = inlined_call_operand.hbm [shape: f32[512,128], index: 1, kind: input, shape index: {}]
  %s2 = inlined_call_operand.vmem [shape: f32[1,128], index: 2, kind: input, shape index: {}]
  %s3 = inlined_call_operand.hbm [shape: f32[8,128], index: 3, kind: output, shape index: {}]
  %s4 = sld [smem:[#allocation0]]
  $region26: #{_fc_forward.1} parent=0
    _
  %s6 = ssub.s32 1, %s4
  %s7 = scalar_select 0, %s6, %s4
  $region1: #{_fc_forward.1} parent=0
    #allocation2 [shape = 'u8[262144]{0}', space=vmem, size = 0x40000, scoped, tag = 'input window, operand 1, single buffered']
    #allocation3 [shape = 's32[1]{0}', space=sflag, size = 0x4, scoped, tag = 'scoped memory for _fc_forward.1']
    #allocation4 [shape = 's32[1]{0}', space=sflag, size = 0x4, scoped, tag = 'scoped memory for _fc_forward.1']
    #allocation5 [shape = 'u8[4096]{0}', space=vmem, size = 0x1000, scoped, tag = 'output window, operand 0, single buffered']
    %8 = vsyncpa [#allocation3], 0
    %9 = vsyncpa [#allocation4], 0
    // Predicated region
    $region2: #{_fc_forward.1} parent=1 // pred_check
      _
    $region3: #{_fc_forward.1} parent=1 // pred_check_branch
      %11 = sbr.rel (0) target = $region5
    $region4: #{_fc_forward.1} parent=1 // pred_region
      _
    $region5: #{_fc_forward.1} parent=1 // pred_fallthru
      _
    // Predicated region
    $region6: #{_fc_forward.1} parent=1 // pred_check
      _
    $region7: #{_fc_forward.1} parent=1 // pred_check_branch
      %13 = sbr.rel (0) target = $region9
    $region8: #{_fc_forward.1} parent=1 // pred_region
      %s15 = ssub.s32 8192, 8192
      %16 = vsyncadd [#allocation3], %s15
      %s17 = sshll.u32 [#allocation2], 4
      %s18 = int_to_ptr.vmem [resolvable:$true] %s17
      %23 = dma.hbm_to_vmem [thread:$0]  %s1, 8192, %s18, [#allocation3], 128, 128, 8
    $region9: #{_fc_forward.1} parent=1 // pred_fallthru
      _
    // Predicated region
    $region10: #{_fc_forward.1} parent=1 // pred_check
      _
    $region11: #{_fc_forward.1} parent=1 // pred_check_branch
      %25 = sbr.rel (0) target = $region13
    $region12: #{_fc_forward.1} parent=1 // pred_region
      _
    $region13: #{_fc_forward.1} parent=1 // pred_fallthru
      _
    // Predicated region
    $region14: #{_fc_forward.1} parent=1 // pred_check
      _
    $region15: #{_fc_forward.1} parent=1 // pred_check_branch
      %27 = sbr.rel (0) target = $region17
    $region16: #{_fc_forward.1} parent=1 // pred_region
      %28 = dma.done [#allocation3], 8192
    $region17: #{_fc_forward.1} parent=1 // pred_fallthru
      _
    %v29 = vld [vmem:[%s0] sm:$0xff]
    %v30 = vld [vmem:[%s0 + $0x8] sm:$0xff]
    %v31 = vld [vmem:[%s0 + $0x10] sm:$0xff]
    %v32 = vld [vmem:[%s0 + $0x18] sm:$0xff]
    %v33 = vld [vmem:[#allocation2] sm:$0xff]
    %v34 = vld [vmem:[#allocation2 + $0x8] sm:$0xff]
    %v35 = vld [vmem:[#allocation2 + $0x10] sm:$0xff]
    %v36 = vld [vmem:[#allocation2 + $0x18] sm:$0xff]
    %v37 = vld [vmem:[#allocation2 + $0x20] sm:$0xff]
    %v38 = vld [vmem:[#allocation2 + $0x28] sm:$0xff]
    %v39 = vld [vmem:[#allocation2 + $0x30] sm:$0xff]
    %v40 = vld [vmem:[#allocation2 + $0x38] sm:$0xff]
    %v41 = vld [vmem:[#allocation2 + $0x40] sm:$0xff]
    %v42 = vld [vmem:[#allocation2 + $0x48] sm:$0xff]
    %v43 = vld [vmem:[#allocation2 + $0x50] sm:$0xff]
    %v44 = vld [vmem:[#allocation2 + $0x58] sm:$0xff]
    %v45 = vld [vmem:[#allocation2 + $0x60] sm:$0xff]
    %v46 = vld [vmem:[#allocation2 + $0x68] sm:$0xff]
    %v47 = vld [vmem:[#allocation2 + $0x70] sm:$0xff]
    %v48 = vld [vmem:[#allocation2 + $0x78] sm:$0xff]
    %v49 = vld [vmem:[#allocation2 + $0x80] sm:$0xff]
    %v50 = vld [vmem:[#allocation2 + $0x88] sm:$0xff]
    %v51 = vld [vmem:[#allocation2 + $0x90] sm:$0xff]
    %v52 = vld [vmem:[#allocation2 + $0x98] sm:$0xff]
    %v53 = vld [vmem:[#allocation2 + $0xa0] sm:$0xff]
    %v54 = vld [vmem:[#allocation2 + $0xa8] sm:$0xff]
    %v55 = vld [vmem:[#allocation2 + $0xb0] sm:$0xff]
    %v56 = vld [vmem:[#allocation2 + $0xb8] sm:$0xff]
    %v57 = vld [vmem:[#allocation2 + $0xc0] sm:$0xff]
    %v58 = vld [vmem:[#allocation2 + $0xc8] sm:$0xff]
    %v59 = vld [vmem:[#allocation2 + $0xd0] sm:$0xff]
    %v60 = vld [vmem:[#allocation2 + $0xd8] sm:$0xff]
    %v61 = vld [vmem:[#allocation2 + $0xe0] sm:$0xff]
    %v62 = vld [vmem:[#allocation2 + $0xe8] sm:$0xff]
    %v63 = vld [vmem:[#allocation2 + $0xf0] sm:$0xff]
    %v64 = vld [vmem:[#allocation2 + $0xf8] sm:$0xff]
    %v65 = vld [vmem:[#allocation2 + $0x100] sm:$0xff]
    %v66 = vld [vmem:[#allocation2 + $0x108] sm:$0xff]
    %v67 = vld [vmem:[#allocation2 + $0x110] sm:$0xff]
    %v68 = vld [vmem:[#allocation2 + $0x118] sm:$0xff]
    %v69 = vld [vmem:[#allocation2 + $0x120] sm:$0xff]
    %v70 = vld [vmem:[#allocation2 + $0x128] sm:$0xff]
    %v71 = vld [vmem:[#allocation2 + $0x130] sm:$0xff]
    %v72 = vld [vmem:[#allocation2 + $0x138] sm:$0xff]
    %v73 = vld [vmem:[#allocation2 + $0x140] sm:$0xff]
    %v74 = vld [vmem:[#allocation2 + $0x148] sm:$0xff]
    %v75 = vld [vmem:[#allocation2 + $0x150] sm:$0xff]
    %v76 = vld [vmem:[#allocation2 + $0x158] sm:$0xff]
    %v77 = vld [vmem:[#allocation2 + $0x160] sm:$0xff]
    %v78 = vld [vmem:[#allocation2 + $0x168] sm:$0xff]
    %v79 = vld [vmem:[#allocation2 + $0x170] sm:$0xff]
    %v80 = vld [vmem:[#allocation2 + $0x178] sm:$0xff]
    %v81 = vld [vmem:[#allocation2 + $0x180] sm:$0xff]
    %v82 = vld [vmem:[#allocation2 + $0x188] sm:$0xff]
    %v83 = vld [vmem:[#allocation2 + $0x190] sm:$0xff]
    %v84 = vld [vmem:[#allocation2 + $0x198] sm:$0xff]
    %v85 = vld [vmem:[#allocation2 + $0x1a0] sm:$0xff]
    %v86 = vld [vmem:[#allocation2 + $0x1a8] sm:$0xff]
    %v87 = vld [vmem:[#allocation2 + $0x1b0] sm:$0xff]
    %v88 = vld [vmem:[#allocation2 + $0x1b8] sm:$0xff]
    %v89 = vld [vmem:[#allocation2 + $0x1c0] sm:$0xff]
    %v90 = vld [vmem:[#allocation2 + $0x1c8] sm:$0xff]
    %v91 = vld [vmem:[#allocation2 + $0x1d0] sm:$0xff]
    %v92 = vld [vmem:[#allocation2 + $0x1d8] sm:$0xff]
    %v93 = vld [vmem:[#allocation2 + $0x1e0] sm:$0xff]
    %v94 = vld [vmem:[#allocation2 + $0x1e8] sm:$0xff]
    %v95 = vld [vmem:[#allocation2 + $0x1f0] sm:$0xff]
    %v96 = vld [vmem:[#allocation2 + $0x1f8] sm:$0xff]
    %v97 = vld [vmem:[%s2] sm:$0x1]
    %v99 = vlaneseq
    %v100 = vshrl.u32 %v99, 7
    %v101 = vsub.s32 0, %v100
    %v102 = vrot.slane %v97, %v101
    %104 = vmatprep.subr.mxu0 0.0
    %105 = vmatpush1.msra.mxu0 %v33
    %106 = vmatprep.subr.mxu0 0.0
    %107 = vmatpush1.msra.mxu0 %v34
    %108 = vmatprep.subr.mxu0 0.0
    %109 = vmatpush1.msra.mxu0 %v35
    %110 = vmatprep.subr.mxu0 0.0
    %111 = vmatpush1.msra.mxu0 %v36
    %112 = vmatprep.subr.mxu0 0.0
    %113 = vmatpush1.msra.mxu0 %v37
    %114 = vmatprep.subr.mxu0 0.0
    %115 = vmatpush1.msra.mxu0 %v38
    %116 = vmatprep.subr.mxu0 0.0
    %117 = vmatpush1.msra.mxu0 %v39
    %118 = vmatprep.subr.mxu0 0.0
    %119 = vmatpush1.msra.mxu0 %v40
    %120 = vmatprep.subr.mxu0 0.0
    %121 = vmatpush1.msra.mxu0 %v41
    %122 = vmatprep.subr.mxu0 0.0
    %123 = vmatpush1.msra.mxu0 %v42
    %124 = vmatprep.subr.mxu0 0.0
    %125 = vmatpush1.msra.mxu0 %v43
    %126 = vmatprep.subr.mxu0 0.0
    %127 = vmatpush1.msra.mxu0 %v44
    %128 = vmatprep.subr.mxu0 0.0
    %129 = vmatpush1.msra.mxu0 %v45
    %130 = vmatprep.subr.mxu0 0.0
    %131 = vmatpush1.msra.mxu0 %v46
    %132 = vmatprep.subr.mxu0 0.0
    %133 = vmatpush1.msra.mxu0 %v47
    %134 = vmatprep.subr.mxu0 0.0
    %135 = vmatpush1.msra.mxu0 %v48
    %136 = vmatprep.subr.mxu0 0.0
    %137 = vmatpush1.msra.mxu0 %v49
    %138 = vmatprep.subr.mxu0 0.0
    %139 = vmatpush1.msra.mxu0 %v50
    %140 = vmatprep.subr.mxu0 0.0
    %141 = vmatpush1.msra.mxu0 %v51
    %142 = vmatprep.subr.mxu0 0.0
    %143 = vmatpush1.msra.mxu0 %v52
    %144 = vmatprep.subr.mxu0 0.0
    %145 = vmatpush1.msra.mxu0 %v53
    %146 = vmatprep.subr.mxu0 0.0
    %147 = vmatpush1.msra.mxu0 %v54
    %148 = vmatprep.subr.mxu0 0.0
    %149 = vmatpush1.msra.mxu0 %v55
    %150 = vmatprep.subr.mxu0 0.0
    %151 = vmatpush1.msra.mxu0 %v56
    %152 = vmatprep.subr.mxu0 0.0
    %153 = vmatpush1.msra.mxu0 %v57
    %154 = vmatprep.subr.mxu0 0.0
    %155 = vmatpush1.msra.mxu0 %v58
    %156 = vmatprep.subr.mxu0 0.0
    %157 = vmatpush1.msra.mxu0 %v59
    %158 = vmatprep.subr.mxu0 0.0
    %159 = vmatpush1.msra.mxu0 %v60
    %160 = vmatprep.subr.mxu0 0.0
    %161 = vmatpush1.msra.mxu0 %v61
    %162 = vmatprep.subr.mxu0 0.0
    %163 = vmatpush1.msra.mxu0 %v62
    %164 = vmatprep.subr.mxu0 0.0
    %165 = vmatpush1.msra.mxu0 %v63
    %166 = vmatprep.subr.mxu0 0.0
    %167 = vmatpush1.msra.mxu0 %v64
    %168 = vmatprep.mubr.f32.mxu0 %v30
    %169 = vmatmul.mubr.f32.gmra.mrb[0].mxu0 %v29
    %v170 = vpop.f32.mrb[0].mxu0
    %v171 = vadd.f32 %v102, %v170
    %v172 = vpop.f32.mrb[0].mxu0
    %173 = vdwg.mxu0
    %174 = vmatprep.subr.mxu0 0.0
    %175 = vmatpush1.msra.mxu0 %v65
    %176 = vmatprep.subr.mxu0 0.0
    %177 = vmatpush1.msra.mxu0 %v66
    %178 = vmatprep.subr.mxu0 0.0
    %179 = vmatpush1.msra.mxu0 %v67
    %180 = vmatprep.subr.mxu0 0.0
    %181 = vmatpush1.msra.mxu0 %v68
    %182 = vmatprep.subr.mxu0 0.0
    %183 = vmatpush1.msra.mxu0 %v69
    %184 = vmatprep.subr.mxu0 0.0
    %185 = vmatpush1.msra.mxu0 %v70
    %186 = vmatprep.subr.mxu0 0.0
    %187 = vmatpush1.msra.mxu0 %v71
    %188 = vmatprep.subr.mxu0 0.0
    %189 = vmatpush1.msra.mxu0 %v72
    %190 = vmatprep.subr.mxu0 0.0
    %191 = vmatpush1.msra.mxu0 %v73
    %192 = vmatprep.subr.mxu0 0.0
    %193 = vmatpush1.msra.mxu0 %v74
    %194 = vmatprep.subr.mxu0 0.0
    %195 = vmatpush1.msra.mxu0 %v75
    %196 = vmatprep.subr.mxu0 0.0
    %197 = vmatpush1.msra.mxu0 %v76
    %198 = vmatprep.subr.mxu0 0.0
    %199 = vmatpush1.msra.mxu0 %v77
    %200 = vmatprep.subr.mxu0 0.0
    %201 = vmatpush1.msra.mxu0 %v78
    %202 = vmatprep.subr.mxu0 0.0
    %203 = vmatpush1.msra.mxu0 %v79
    %204 = vmatprep.subr.mxu0 0.0
    %205 = vmatpush1.msra.mxu0 %v80
    %206 = vmatprep.subr.mxu0 0.0
    %207 = vmatpush1.msra.mxu0 %v81
    %208 = vmatprep.subr.mxu0 0.0
    %209 = vmatpush1.msra.mxu0 %v82
    %210 = vmatprep.subr.mxu0 0.0
    %211 = vmatpush1.msra.mxu0 %v83
    %212 = vmatprep.subr.mxu0 0.0
    %213 = vmatpush1.msra.mxu0 %v84
    %214 = vmatprep.subr.mxu0 0.0
    %215 = vmatpush1.msra.mxu0 %v85
    %216 = vmatprep.subr.mxu0 0.0
    %217 = vmatpush1.msra.mxu0 %v86
    %218 = vmatprep.subr.mxu0 0.0
    %219 = vmatpush1.msra.mxu0 %v87
    %220 = vmatprep.subr.mxu0 0.0
    %221 = vmatpush1.msra.mxu0 %v88
    %222 = vmatprep.subr.mxu0 0.0
    %223 = vmatpush1.msra.mxu0 %v89
    %224 = vmatprep.subr.mxu0 0.0
    %225 = vmatpush1.msra.mxu0 %v90
    %226 = vmatprep.subr.mxu0 0.0
    %227 = vmatpush1.msra.mxu0 %v91
    %228 = vmatprep.subr.mxu0 0.0
    %229 = vmatpush1.msra.mxu0 %v92
    %230 = vmatprep.subr.mxu0 0.0
    %231 = vmatpush1.msra.mxu0 %v93
    %232 = vmatprep.subr.mxu0 0.0
    %233 = vmatpush1.msra.mxu0 %v94
    %234 = vmatprep.subr.mxu0 0.0
    %235 = vmatpush1.msra.mxu0 %v95
    %236 = vmatprep.subr.mxu0 0.0
    %237 = vmatpush1.msra.mxu0 %v96
    %238 = vmatprep.mubr.f32.mxu0 %v32
    %239 = vmatmul.mubr.f32.gmra.mrb[0].mxu0 %v31
    %v240 = vpop.f32.mrb[0].mxu0
    %v241 = vadd.f32 %v171, %v240
    %v242 = vpop.f32.mrb[0].mxu0
    %243 = vdwg.mxu0
    %244 = vst [vmem:[#allocation5] sm:$0xff] %v241
    // Predicated region
    $region18: #{_fc_forward.1} parent=1 // pred_check
      _
    $region19: #{_fc_forward.1} parent=1 // pred_check_branch
      %246 = sbr.rel (0) target = $region21
    $region20: #{_fc_forward.1} parent=1 // pred_region
      %s248 = ssub.s32 128, 128
      %249 = vsyncadd [#allocation4], %s248
      %s251 = sshll.u32 [#allocation5], 4
      %s252 = int_to_ptr.vmem [resolvable:$true] %s251
      %254 = dma.vmem_to_hbm [thread:$0]  %s252, 128, %s3, [#allocation4]
    $region21: #{_fc_forward.1} parent=1 // pred_fallthru
      _
    // Predicated region
    $region22: #{_fc_forward.1} parent=1 // pred_check
      _
    $region23: #{_fc_forward.1} parent=1 // pred_check_branch
      %256 = sbr.rel (0) target = $region25
    $region24: #{_fc_forward.1} parent=1 // pred_region
      %257 = dma.done [#allocation4], 128
    $region25: #{_fc_forward.1} parent=1 // pred_fallthru
      _
    %258 = vsyncpa [#allocation3], 1
    %259 = vsyncpa [#allocation4], 1

</llo_original>
